<compile_context>
chip_gen: v5e
topology: v5e:2x2
jax: 0.10.0
libtpu: 0.0.40
codegen_flags: <defaults>
</compile_context>

<pallas_src>
import functools

import jax
import jax.numpy as jnp
from jax import lax
from jax.experimental import pallas as pl
from jax.experimental.pallas import tpu as pltpu

LOG_STD_MAX = 0.0
LOG_STD_MIN = -5.0

HIDDEN = 512
LANE = 128
SUBLANE = 8


def _round_up(x, m):
    return ((x + m - 1) // m) * m


def _policy_kernel(x_ref, w1_ref, b1_ref, wh_ref, bh_ref, out_ref, *, out_c):
    # fc1: cast activations to the bf16 weight dtype in-kernel (cheap VPU op),
    # MXU matmul with f32 accumulation; bias + relu stay f32.
    x = x_ref[...].astype(w1_ref.dtype)
    h = jnp.dot(x, w1_ref[...], preferred_element_type=jnp.float32)
    h = jnp.maximum(h + b1_ref[...], 0.0)

    # Fused heads: ONE lane-dense [512, 128] matmul -> single unmasked
    # 128-wide store instead of three masked partial stores.
    y = jnp.dot(h.astype(wh_ref.dtype), wh_ref[...],
                preferred_element_type=jnp.float32) + bh_ref[...]

    # Epilogue with a single transcendental pass over the block:
    #   lanes [0, out_c)        -> sigmoid(y)                        (mean)
    #   lanes [out_c, 2*out_c)  -> MIN + (MAX-MIN)*sigmoid(2y)
    #                              == MIN + 0.5*(MAX-MIN)*(tanh(y)+1) (log_std)
    #   lanes [2*out_c, ...)    -> identity                          (pi_d / pad)
    col = lax.broadcasted_iota(jnp.int32, y.shape, 1)
    is_mean = col < out_c
    z = jnp.where(is_mean, y, 2.0 * y)
    s = pl.reciprocal(1.0 + jnp.exp(-z), approx=True)   # EUP exp + vrcp
    ls = LOG_STD_MIN + (LOG_STD_MAX - LOG_STD_MIN) * s
    out_ref[...] = jnp.where(is_mean, s, jnp.where(col < 2 * out_c, ls, y))


def prepare_params(params, weight_dtype=jnp.bfloat16):
    """One-time packing (call once, reuse every step):

    * fc1 weight cast to bf16 at its true K = F (no K padding).
    * The three tiny heads (mean/logstd/pi_d) fused into one lane-padded
      [512, 128] bf16 weight + f32 bias.
    """
    out_c = int(params["wm"].shape[1])
    out_d = int(params["wd"].shape[1])
    n_out = 2 * out_c + out_d
    out_pad = _round_up(n_out, LANE)

    w1 = params["w1"].astype(weight_dtype)                       # [F, 512]
    b1 = params["b1"].reshape(1, HIDDEN).astype(jnp.float32)

    wh = jnp.zeros((HIDDEN, out_pad), weight_dtype)
    wh = wh.at[:, :out_c].set(params["wm"].astype(weight_dtype))
    wh = wh.at[:, out_c:2 * out_c].set(params["ws"].astype(weight_dtype))
    wh = wh.at[:, 2 * out_c:n_out].set(params["wd"].astype(weight_dtype))

    bh = jnp.zeros((1, out_pad), jnp.float32)
    bh = bh.at[:, :out_c].set(params["bm"].reshape(-1).astype(jnp.float32))
    bh = bh.at[:, out_c:2 * out_c].set(params["bs"].reshape(-1).astype(jnp.float32))
    bh = bh.at[:, 2 * out_c:n_out].set(params["bd"].reshape(-1).astype(jnp.float32))

    return {"w1": w1, "b1": b1, "wh": wh, "bh": bh,
            "out_c": out_c, "out_d": out_d, "n_out": n_out, "out_pad": out_pad}


def policy_forward(x, packed, *, tile_b=1024):
    """x: [B, F] float32 (or bfloat16). packed: output of prepare_params.

    Returns (mean [B, out_c], log_std [B, out_c], pi_d [B, out_d]) in float32.
    """
    B, F = x.shape
    out_c, out_d = packed["out_c"], packed["out_d"]
    n_out, out_pad = packed["n_out"], packed["out_pad"]
    w1, b1, wh, bh = packed["w1"], packed["b1"], packed["wh"], packed["bh"]
    assert w1.shape[0] == F, "x feature dim does not match packed params"

    # Batch tiling: whole batch in one tile when small; otherwise big
    # multiple-of-8 tiles with at least 2 grid steps so both v7x TensorCores
    # get work under dimension_semantics=("parallel",).  No batch padding:
    # full-dim blocks (small B) / 8-aligned blocks (large B) satisfy the
    # (8,128)-or-full-dim rule and the ragged last tile is masked by Pallas.
    if B <= 256:
        tb = B
    else:
        tb = min(tile_b, _round_up(pl.cdiv(B, 2), SUBLANE))
    grid_b = pl.cdiv(B, tb)

    cost = pl.CostEstimate(
        flops=2 * B * F * HIDDEN + 2 * B * HIDDEN * out_pad,
        transcendentals=2 * B * out_pad,                # one exp + one vrcp pass
        bytes_accessed=(x.size * x.dtype.itemsize
                        + (w1.size + wh.size) * w1.dtype.itemsize
                        + (b1.size + bh.size) * 4
                        + B * out_pad * 4),
    )

    # Double-buffered x / out streams + (single-buffered) resident weights.
    vmem_need = (2 * tb * F * x.dtype.itemsize
                 + 2 * tb * out_pad * 4
                 + 2 * (w1.size + wh.size) * w1.dtype.itemsize
                 + 2 * (b1.size + bh.size) * 4)
    vmem_limit = int(min(2 * vmem_need, 48 << 20)) if vmem_need > (12 << 20) else None

    kernel = functools.partial(_policy_kernel, out_c=out_c)

    def run(single_buffer_weights):
        wkw = {"pipeline_mode": pl.Buffered(1)} if single_buffer_weights else {}
        return pl.pallas_call(
            kernel,
            out_shape=jax.ShapeDtypeStruct((B, out_pad), jnp.float32),
            grid=(grid_b,),
            in_specs=[
                pl.BlockSpec((tb, F), lambda i: (i, 0)),                   # x (streamed)
                pl.BlockSpec((F, HIDDEN), lambda i: (0, 0), **wkw),        # w1 (resident)
                pl.BlockSpec((1, HIDDEN), lambda i: (0, 0), **wkw),        # b1 (resident)
                pl.BlockSpec((HIDDEN, out_pad), lambda i: (0, 0), **wkw),  # fused head W
                pl.BlockSpec((1, out_pad), lambda i: (0, 0), **wkw),       # fused head b
            ],
            out_specs=pl.BlockSpec((tb, out_pad), lambda i: (i, 0)),
            compiler_params=pltpu.CompilerParams(
                dimension_semantics=("parallel",),
                vmem_limit_bytes=vmem_limit,
            ),
            cost_estimate=cost,
        )(x, w1, b1, wh, bh)

    try:
        out = run(True)
    except Exception:
        # Installed jax may not support BlockSpec(pipeline_mode=...); the
        # weights are ~0.5 MiB so double-buffering them is only a minor waste.
        out = run(False)

    mean = out[:, :out_c]
    log_std = out[:, out_c:2 * out_c]
    pi_d = out[:, 2 * out_c:n_out]
    return mean, log_std, pi_d


def init_params(key, input_shape, out_c, out_d):
    """Deterministic xavier-uniform init, biases zero (mirrors layer_init)."""
    def xavier(k, fan_in, fan_out):
        limit = jnp.sqrt(6.0 / (fan_in + fan_out))
        return jax.random.uniform(k, (fan_in, fan_out), jnp.float32, -limit, limit)

    k1, k2, k3, k4 = jax.random.split(key, 4)
    return {
        "w1": xavier(k1, input_shape, HIDDEN), "b1": jnp.zeros((1, HIDDEN), jnp.float32),
        "wm": xavier(k2, HIDDEN, out_c),       "bm": jnp.zeros((1, out_c), jnp.float32),
        "ws": xavier(k3, HIDDEN, out_c),       "bs": jnp.zeros((1, out_c), jnp.float32),
        "wd": xavier(k4, HIDDEN, out_d),       "bd": jnp.zeros((1, out_d), jnp.float32),
    }


def policy_forward_ref(x, p, *, weight_dtype=jnp.bfloat16):
    """Pure-JAX reference using the same bf16 weight/activation rounding."""
    q = lambda a: a.astype(weight_dtype).astype(jnp.float32)
    h = jax.nn.relu(q(x) @ q(p["w1"]) + p["b1"].reshape(1, -1))
    hq = q(h)
    mean = jax.nn.sigmoid(hq @ q(p["wm"]) + p["bm"].reshape(1, -1))
    ls = jnp.tanh(hq @ q(p["ws"]) + p["bs"].reshape(1, -1))
    ls = LOG_STD_MIN + 0.5 * (LOG_STD_MAX - LOG_STD_MIN) * (ls + 1.0)
    pid = hq @ q(p["wd"]) + p["bd"].reshape(1, -1)
    return mean, ls, pid


if __name__ == "__main__":
    key = jax.random.PRNGKey(0)
    k_param, k_x = jax.random.split(key)

    B, input_shape, out_c, out_d = 2, 32, 4, 6
    params = init_params(k_param, input_shape, out_c, out_d)
    packed = prepare_params(params)          # one-time weight packing
    x = jax.random.normal(k_x, (B, input_shape), jnp.float32)

    mean, log_std, pi_d = policy_forward(x, packed)
    jax.block_until_ready((mean, log_std, pi_d))

    assert mean.shape == (B, out_c)
    assert log_std.shape == (B, out_c)
    assert pi_d.shape == (B, out_d)

    # Sanity check against a pure-JAX reference with the same bf16 rounding
    # (tolerance covers the in-kernel approx reciprocal + tanh<->sigmoid identity).
    mean_r, ls_r, pid_r = policy_forward_ref(x, params)
    assert jnp.allclose(mean, mean_r, atol=1e-2, rtol=1e-2), "mean mismatch"
    assert jnp.allclose(log_std, ls_r, atol=1e-2, rtol=1e-2), "log_std mismatch"
    assert jnp.allclose(pi_d, pid_r, atol=1e-2, rtol=1e-2), "pi_d mismatch"

    print("KERNEL_OK")
</pallas_src>

<mosaic_0001>
module attributes {stable_mosaic.version = 11 : i64} {
  func.func @_policy_kernel(%arg0: i32, %arg1: memref<2x32xf32, #tpu.memory_space<vmem>>, %arg2: memref<32x512xbf16, #tpu.memory_space<vmem>>, %arg3: memref<1x512xf32, #tpu.memory_space<vmem>>, %arg4: memref<512x128xbf16, #tpu.memory_space<vmem>>, %arg5: memref<1x128xf32, #tpu.memory_space<vmem>>, %arg6: memref<2x128xf32, #tpu.memory_space<vmem>>) attributes {dimension_semantics = [#tpu.dimension_semantics<parallel>], iteration_bounds = array<i64: 1>, scalar_prefetch = 0 : i64, scratch_operands = 0 : i64, tpu.core_type = #tpu.core_type<tc>, window_params = [{transform_indices = @transform_0, window_bounds = array<i64: 2, 32>}, {pipeline_mode = #tpu.pipeline_mode<synchronous>, transform_indices = @transform_1, window_bounds = array<i64: 32, 512>}, {pipeline_mode = #tpu.pipeline_mode<synchronous>, transform_indices = @transform_2, window_bounds = array<i64: 1, 512>}, {pipeline_mode = #tpu.pipeline_mode<synchronous>, transform_indices = @transform_3, window_bounds = array<i64: 512, 128>}, {pipeline_mode = #tpu.pipeline_mode<synchronous>, transform_indices = @transform_4, window_bounds = array<i64: 1, 128>}, {transform_indices = @transform_5, window_bounds = array<i64: 2, 128>}]} {
    %c0 = arith.constant 0 : index
    %c0_0 = arith.constant 0 : index
    %0 = vector.load %arg1[%c0, %c0_0] : memref<2x32xf32, #tpu.memory_space<vmem>>, vector<2x32xf32>
    %1 = arith.truncf %0 : vector<2x32xf32> to vector<2x32xbf16>
    %c0_1 = arith.constant 0 : index
    %c0_2 = arith.constant 0 : index
    %2 = vector.load %arg2[%c0_1, %c0_2] : memref<32x512xbf16, #tpu.memory_space<vmem>>, vector<32x512xbf16>
    %cst = arith.constant dense<0.000000e+00> : vector<2x512xf32>
    %3 = tpu.matmul %1, %2, %cst {dimension_numbers = #tpu.dot_dimension_numbers<[1], [0], [0], [1], [0, 0, 1, 1], [], []>} : vector<2x32xbf16>, vector<32x512xbf16>, vector<2x512xf32> -> vector<2x512xf32>
    %c0_3 = arith.constant 0 : index
    %c0_4 = arith.constant 0 : index
    %4 = vector.load %arg3[%c0_3, %c0_4] : memref<1x512xf32, #tpu.memory_space<vmem>>, vector<1x512xf32>
    %5 = vector.broadcast %4 : vector<1x512xf32> to vector<2x512xf32>
    %6 = arith.addf %3, %5 : vector<2x512xf32>
    %cst_5 = arith.constant 0.000000e+00 : f32
    %7 = vector.broadcast %cst_5 : f32 to vector<2x512xf32>
    %8 = arith.maximumf %6, %7 : vector<2x512xf32>
    %9 = arith.truncf %8 : vector<2x512xf32> to vector<2x512xbf16>
    %c0_6 = arith.constant 0 : index
    %c0_7 = arith.constant 0 : index
    %10 = vector.load %arg4[%c0_6, %c0_7] : memref<512x128xbf16, #tpu.memory_space<vmem>>, vector<512x128xbf16>
    %cst_8 = arith.constant dense<0.000000e+00> : vector<2x128xf32>
    %11 = tpu.matmul %9, %10, %cst_8 {dimension_numbers = #tpu.dot_dimension_numbers<[1], [0], [0], [1], [0, 0, 1, 1], [], []>} : vector<2x512xbf16>, vector<512x128xbf16>, vector<2x128xf32> -> vector<2x128xf32>
    %c0_9 = arith.constant 0 : index
    %c0_10 = arith.constant 0 : index
    %12 = vector.load %arg5[%c0_9, %c0_10] : memref<1x128xf32, #tpu.memory_space<vmem>>, vector<1x128xf32>
    %13 = vector.broadcast %12 : vector<1x128xf32> to vector<2x128xf32>
    %14 = arith.addf %11, %13 : vector<2x128xf32>
    %15 = tpu.iota {dimensions = array<i32: 1>} : vector<2x128xi32>
    %c4_i32 = arith.constant 4 : i32
    %16 = vector.broadcast %c4_i32 : i32 to vector<2x128xi32>
    %17 = arith.cmpi slt, %15, %16 : vector<2x128xi32>
    %cst_11 = arith.constant 2.000000e+00 : f32
    %18 = vector.broadcast %cst_11 : f32 to vector<2x128xf32>
    %19 = arith.mulf %18, %14 : vector<2x128xf32>
    %20 = arith.select %17, %14, %19 : vector<2x128xi1>, vector<2x128xf32>
    %cst_12 = arith.constant 0.000000e+00 : f32
    %21 = vector.broadcast %cst_12 : f32 to vector<2x128xf32>
    %22 = arith.subf %21, %20 : vector<2x128xf32>
    %23 = math.exp %22 : vector<2x128xf32>
    %cst_13 = arith.constant 1.000000e+00 : f32
    %24 = vector.broadcast %cst_13 : f32 to vector<2x128xf32>
    %25 = arith.addf %24, %23 : vector<2x128xf32>
    %26 = tpu.reciprocal %25 {approx = true} : vector<2x128xf32> -> vector<2x128xf32>
    %cst_14 = arith.constant 5.000000e+00 : f32
    %27 = vector.broadcast %cst_14 : f32 to vector<2x128xf32>
    %28 = arith.mulf %27, %26 : vector<2x128xf32>
    %cst_15 = arith.constant -5.000000e+00 : f32
    %29 = vector.broadcast %cst_15 : f32 to vector<2x128xf32>
    %30 = arith.addf %29, %28 : vector<2x128xf32>
    %c8_i32 = arith.constant 8 : i32
    %31 = vector.broadcast %c8_i32 : i32 to vector<2x128xi32>
    %32 = arith.cmpi slt, %15, %31 : vector<2x128xi32>
    %33 = arith.select %32, %30, %14 : vector<2x128xi1>, vector<2x128xf32>
    %34 = arith.select %17, %26, %33 : vector<2x128xi1>, vector<2x128xf32>
    %c0_16 = arith.constant 0 : index
    %c0_17 = arith.constant 0 : index
    %35 = vector.load %arg6[%c0_16, %c0_17] : memref<2x128xf32, #tpu.memory_space<vmem>>, vector<2x128xf32>
    tpu.vector_store %arg6[%c0_16, %c0_17], %34 {strides = array<i32>} : memref<2x128xf32, #tpu.memory_space<vmem>>, vector<2x128xf32>,
    return
  }
  func.func @transform_0(%arg0: i32) -> (i32, i32) {
    %c0_i32 = arith.constant 0 : i32
    %c0_i32_0 = arith.constant 0 : i32
    return %arg0, %c0_i32 : i32, i32
  }
  func.func @transform_1(%arg0: i32) -> (i32, i32) {
    %c0_i32 = arith.constant 0 : i32
    %c0_i32_0 = arith.constant 0 : i32
    %c0_i32_1 = arith.constant 0 : i32
    return %c0_i32, %c0_i32_0 : i32, i32
  }
  func.func @transform_2(%arg0: i32) -> (i32, i32) {
    %c0_i32 = arith.constant 0 : i32
    %c0_i32_0 = arith.constant 0 : i32
    %c0_i32_1 = arith.constant 0 : i32
    return %c0_i32, %c0_i32_0 : i32, i32
  }
  func.func @transform_3(%arg0: i32) -> (i32, i32) {
    %c0_i32 = arith.constant 0 : i32
    %c0_i32_0 = arith.constant 0 : i32
    %c0_i32_1 = arith.constant 0 : i32
    return %c0_i32, %c0_i32_0 : i32, i32
  }
  func.func @transform_4(%arg0: i32) -> (i32, i32) {
    %c0_i32 = arith.constant 0 : i32
    %c0_i32_0 = arith.constant 0 : i32
    %c0_i32_1 = arith.constant 0 : i32
    return %c0_i32, %c0_i32_0 : i32, i32
  }
  func.func @transform_5(%arg0: i32) -> (i32, i32) {
    %c0_i32 = arith.constant 0 : i32
    %c0_i32_0 = arith.constant 0 : i32
    return %arg0, %c0_i32 : i32, i32
  }
}

module attributes {stable_mosaic.version = 11 : i64} {
  func.func @_policy_kernel(%arg0: i32, %arg1: memref<2x32xf32, #tpu.memory_space<vmem>>, %arg2: memref<32x512xbf16, #tpu.memory_space<vmem>>, %arg3: memref<1x512xf32, #tpu.memory_space<vmem>>, %arg4: memref<512x128xbf16, #tpu.memory_space<vmem>>, %arg5: memref<1x128xf32, #tpu.memory_space<vmem>>, %arg6: memref<2x128xf32, #tpu.memory_space<vmem>>) attributes {dimension_semantics = [#tpu.dimension_semantics<parallel>], iteration_bounds = array<i64: 1>, scalar_prefetch = 0 : i64, scratch_operands = 0 : i64, tpu.core_type = #tpu.core_type<tc>, window_params = [{transform_indices = @transform_0, window_bounds = array<i64: 2, 32>}, {pipeline_mode = #tpu.pipeline_mode<synchronous>, transform_indices = @transform_1, window_bounds = array<i64: 32, 512>}, {pipeline_mode = #tpu.pipeline_mode<synchronous>, transform_indices = @transform_2, window_bounds = array<i64: 1, 512>}, {pipeline_mode = #tpu.pipeline_mode<synchronous>, transform_indices = @transform_3, window_bounds = array<i64: 512, 128>}, {pipeline_mode = #tpu.pipeline_mode<synchronous>, transform_indices = @transform_4, window_bounds = array<i64: 1, 128>}, {transform_indices = @transform_5, window_bounds = array<i64: 2, 128>}]} {
    %c0 = arith.constant 0 : index
    %c0_0 = arith.constant 0 : index
    %0 = vector.load %arg1[%c0, %c0_0] : memref<2x32xf32, #tpu.memory_space<vmem>>, vector<2x32xf32>
    %1 = arith.truncf %0 : vector<2x32xf32> to vector<2x32xbf16>
    %c0_1 = arith.constant 0 : index
    %c0_2 = arith.constant 0 : index
    %2 = vector.load %arg2[%c0_1, %c0_2] : memref<32x512xbf16, #tpu.memory_space<vmem>>, vector<32x512xbf16>
    %cst = arith.constant dense<0.000000e+00> : vector<2x512xf32>
    %3 = tpu.matmul %1, %2, %cst {dimension_numbers = #tpu.dot_dimension_numbers<[1], [0], [0], [1], [0, 0, 1, 1], [], []>} : vector<2x32xbf16>, vector<32x512xbf16>, vector<2x512xf32> -> vector<2x512xf32>
    %c0_3 = arith.constant 0 : index
    %c0_4 = arith.constant 0 : index
    %4 = vector.load %arg3[%c0_3, %c0_4] : memref<1x512xf32, #tpu.memory_space<vmem>>, vector<1x512xf32>
    %5 = vector.broadcast %4 : vector<1x512xf32> to vector<2x512xf32>
    %6 = arith.addf %3, %5 : vector<2x512xf32>
    %cst_5 = arith.constant 0.000000e+00 : f32
    %7 = vector.broadcast %cst_5 : f32 to vector<2x512xf32>
    %8 = arith.maximumf %6, %7 : vector<2x512xf32>
    %9 = arith.truncf %8 : vector<2x512xf32> to vector<2x512xbf16>
    %c0_6 = arith.constant 0 : index
    %c0_7 = arith.constant 0 : index
    %10 = vector.load %arg4[%c0_6, %c0_7] : memref<512x128xbf16, #tpu.memory_space<vmem>>, vector<512x128xbf16>
    %cst_8 = arith.constant dense<0.000000e+00> : vector<2x128xf32>
    %11 = tpu.matmul %9, %10, %cst_8 {dimension_numbers = #tpu.dot_dimension_numbers<[1], [0], [0], [1], [0, 0, 1, 1], [], []>} : vector<2x512xbf16>, vector<512x128xbf16>, vector<2x128xf32> -> vector<2x128xf32>
    %c0_9 = arith.constant 0 : index
    %c0_10 = arith.constant 0 : index
    %12 = vector.load %arg5[%c0_9, %c0_10] : memref<1x128xf32, #tpu.memory_space<vmem>>, vector<1x128xf32>
    %13 = vector.broadcast %12 : vector<1x128xf32> to vector<2x128xf32>
    %14 = arith.addf %11, %13 : vector<2x128xf32>
    %15 = tpu.iota {dimensions = array<i32: 1>} : vector<2x128xi32>
    %c4_i32 = arith.constant 4 : i32
    %16 = vector.broadcast %c4_i32 : i32 to vector<2x128xi32>
    %17 = arith.cmpi slt, %15, %16 : vector<2x128xi32>
    %cst_11 = arith.constant 2.000000e+00 : f32
    %18 = vector.broadcast %cst_11 : f32 to vector<2x128xf32>
    %19 = arith.mulf %18, %14 : vector<2x128xf32>
    %20 = arith.select %17, %14, %19 : vector<2x128xi1>, vector<2x128xf32>
    %cst_12 = arith.constant 0.000000e+00 : f32
    %21 = vector.broadcast %cst_12 : f32 to vector<2x128xf32>
    %22 = arith.subf %21, %20 : vector<2x128xf32>
    %23 = math.exp %22 : vector<2x128xf32>
    %cst_13 = arith.constant 1.000000e+00 : f32
    %24 = vector.broadcast %cst_13 : f32 to vector<2x128xf32>
    %25 = arith.addf %24, %23 : vector<2x128xf32>
    %26 = tpu.reciprocal %25 {approx = true} : vector<2x128xf32> -> vector<2x128xf32>
    %cst_14 = arith.constant 5.000000e+00 : f32
    %27 = vector.broadcast %cst_14 : f32 to vector<2x128xf32>
    %28 = arith.mulf %27, %26 : vector<2x128xf32>
    %cst_15 = arith.constant -5.000000e+00 : f32
    %29 = vector.broadcast %cst_15 : f32 to vector<2x128xf32>
    %30 = arith.addf %29, %28 : vector<2x128xf32>
    %c8_i32 = arith.constant 8 : i32
    %31 = vector.broadcast %c8_i32 : i32 to vector<2x128xi32>
    %32 = arith.cmpi slt, %15, %31 : vector<2x128xi32>
    %33 = arith.select %32, %30, %14 : vector<2x128xi1>, vector<2x128xf32>
    %34 = arith.select %17, %26, %33 : vector<2x128xi1>, vector<2x128xf32>
    %c0_16 = arith.constant 0 : index
    %c0_17 = arith.constant 0 : index
    %35 = vector.load %arg6[%c0_16, %c0_17] : memref<2x128xf32, #tpu.memory_space<vmem>>, vector<2x128xf32>
    tpu.vector_store %arg6[%c0_16, %c0_17], %34 {strides = array<i32>} : memref<2x128xf32, #tpu.memory_space<vmem>>, vector<2x128xf32>,
    return
  }
  func.func @transform_0(%arg0: i32) -> (i32, i32) {
    %c0_i32 = arith.constant 0 : i32
    %c0_i32_0 = arith.constant 0 : i32
    return %arg0, %c0_i32 : i32, i32
  }
  func.func @transform_1(%arg0: i32) -> (i32, i32) {
    %c0_i32 = arith.constant 0 : i32
    %c0_i32_0 = arith.constant 0 : i32
    %c0_i32_1 = arith.constant 0 : i32
    return %c0_i32, %c0_i32_0 : i32, i32
  }
  func.func @transform_2(%arg0: i32) -> (i32, i32) {
    %c0_i32 = arith.constant 0 : i32
    %c0_i32_0 = arith.constant 0 : i32
    %c0_i32_1 = arith.constant 0 : i32
    return %c0_i32, %c0_i32_0 : i32, i32
  }
  func.func @transform_3(%arg0: i32) -> (i32, i32) {
    %c0_i32 = arith.constant 0 : i32
    %c0_i32_0 = arith.constant 0 : i32
    %c0_i32_1 = arith.constant 0 : i32
    return %c0_i32, %c0_i32_0 : i32, i32
  }
  func.func @transform_4(%arg0: i32) -> (i32, i32) {
    %c0_i32 = arith.constant 0 : i32
    %c0_i32_0 = arith.constant 0 : i32
    %c0_i32_1 = arith.constant 0 : i32
    return %c0_i32, %c0_i32_0 : i32, i32
  }
  func.func @transform_5(%arg0: i32) -> (i32, i32) {
    %c0_i32 = arith.constant 0 : i32
    %c0_i32_0 = arith.constant 0 : i32
    return %arg0, %c0_i32 : i32, i32
  }
}

</mosaic_0001>

<llo_original>
// kernel: tpu_custom_call.1
$region0: #{tpu_custom_call.1}
  #allocation0 [shape = 'u32[]', space=smem, size = 0x4, offset = 0x4, fixed_abs, tag = 'smem constant byte address 0x4 - core index']
  #allocation1 [shape = 'u32[72,128]{1,0:T(1,128)}', space=vmem, size = 0x9000, scoped, tag = 'internal scratch']
  %s0 = inlined_call_operand.hbm [shape: f32[2,32], index: 0, kind: input, shape index: {}]
  %s1 = inlined_call_operand.hbm [shape: bf16[32,512], index: 1, kind: input, shape index: {}]
  %s2 = inlined_call_operand.hbm [shape: f32[1,512], index: 2, kind: input, shape index: {}]
  %s3 = inlined_call_operand.hbm [shape: bf16[512,128], index: 3, kind: input, shape index: {}]
  %s4 = inlined_call_operand.vmem [shape: f32[1,128], index: 4, kind: input, shape index: {}]
  %s5 = inlined_call_operand.hbm [shape: f32[2,128], index: 5, kind: output, shape index: {}]
  %s6 = sld [smem:[#allocation0]]
  $region46: #{tpu_custom_call.1} parent=0
    _
  %s8 = ssub.s32 1, %s6
  %s9 = scalar_select 0, %s8, %s6
  $region1: #{tpu_custom_call.1} parent=0
    #allocation2 [shape = 'u8[1024]{0}', space=vmem, size = 0x400, scoped, tag = 'input window, operand 0, single buffered']
    #allocation3 [shape = 's32[1]{0}', space=sflag, size = 0x4, scoped, tag = 'scoped memory for tpu_custom_call.1']
    #allocation4 [shape = 's32[1]{0}', space=sflag, size = 0x4, scoped, tag = 'scoped memory for tpu_custom_call.1']
    #allocation5 [shape = 'u8[32768]{0}', space=vmem, size = 0x8000, scoped, tag = 'input window, operand 1, single buffered']
    #allocation6 [shape = 's32[1]{0}', space=sflag, size = 0x4, scoped, tag = 'scoped memory for tpu_custom_call.1']
    #allocation7 [shape = 'u8[2048]{0}', space=vmem, size = 0x800, scoped, tag = 'input window, operand 2, single buffered']
    #allocation8 [shape = 'u8[131072]{0}', space=vmem, size = 0x20000, scoped, tag = 'input window, operand 3, single buffered']
    #allocation9 [shape = 's32[1]{0}', space=sflag, size = 0x4, scoped, tag = 'scoped memory for tpu_custom_call.1']
    #allocation10 [shape = 'u8[1024]{0}', space=vmem, size = 0x400, scoped, tag = 'output window, operand 0, single buffered']
    %10 = vsyncpa [#allocation3], 0
    %11 = vsyncpa [#allocation6], 0
    %12 = vsyncpa [#allocation9], 0
    %13 = vsyncpa [#allocation4], 0
    // Predicated region
    $region2: #{tpu_custom_call.1} parent=1 // pred_check
      _
    $region3: #{tpu_custom_call.1} parent=1 // pred_check_branch
      %15 = sbr.rel (0) target = $region5
    $region4: #{tpu_custom_call.1} parent=1 // pred_region
      %17 = vsyncadd [#allocation3], 0
      %s19 = sshll.u32 %s0, 4
      %s20 = int_to_ptr.hbm [resolvable:$true] %s19
      %s21 = sshll.u32 [#allocation2], 4
      %s22 = int_to_ptr.vmem [resolvable:$true] %s21
      %24 = dma.hbm_to_vmem [thread:$0]  %s20, 32, %s22, [#allocation3]
    $region5: #{tpu_custom_call.1} parent=1 // pred_fallthru
      _
    // Predicated region
    $region6: #{tpu_custom_call.1} parent=1 // pred_check
      _
    $region7: #{tpu_custom_call.1} parent=1 // pred_check_branch
      %26 = sbr.rel (0) target = $region9
    $region8: #{tpu_custom_call.1} parent=1 // pred_region
      %28 = vsyncadd [#allocation6], 0
      %s29 = sshll.u32 %s1, 4
      %s30 = int_to_ptr.hbm [resolvable:$true] %s29
      %s31 = sshll.u32 [#allocation5], 4
      %s32 = int_to_ptr.vmem [resolvable:$true] %s31
      %37 = dma.hbm_to_vmem [thread:$0]  %s30, 1024, %s32, [#allocation6], 256, 256, 16
    $region9: #{tpu_custom_call.1} parent=1 // pred_fallthru
      _
    // Predicated region
    $region10: #{tpu_custom_call.1} parent=1 // pred_check
      _
    $region11: #{tpu_custom_call.1} parent=1 // pred_check_branch
      %39 = sbr.rel (0) target = $region13
    $region12: #{tpu_custom_call.1} parent=1 // pred_region
      %41 = vsyncadd [#allocation6], 0
      %s43 = sshll.u32 %s2, 4
      %s44 = int_to_ptr.hbm [resolvable:$true] %s43
      %s45 = sshll.u32 [#allocation7], 4
      %s46 = int_to_ptr.vmem [resolvable:$true] %s45
      %48 = dma.hbm_to_vmem [thread:$0]  %s44, 64, %s46, [#allocation6]
    $region13: #{tpu_custom_call.1} parent=1 // pred_fallthru
      _
    // Predicated region
    $region14: #{tpu_custom_call.1} parent=1 // pred_check
      _
    $region15: #{tpu_custom_call.1} parent=1 // pred_check_branch
      %50 = sbr.rel (0) target = $region17
    $region16: #{tpu_custom_call.1} parent=1 // pred_region
      %52 = vsyncadd [#allocation9], 0
      %s53 = sshll.u32 %s3, 4
      %s54 = int_to_ptr.hbm [resolvable:$true] %s53
      %s55 = sshll.u32 [#allocation8], 4
      %s56 = int_to_ptr.vmem [resolvable:$true] %s55
      %61 = dma.hbm_to_vmem [thread:$0]  %s54, 4096, %s56, [#allocation9], 64, 64, 4
    $region17: #{tpu_custom_call.1} parent=1 // pred_fallthru
      _
    // Predicated region
    $region18: #{tpu_custom_call.1} parent=1 // pred_check
      _
    $region19: #{tpu_custom_call.1} parent=1 // pred_check_branch
      %63 = sbr.rel (0) target = $region21
    $region20: #{tpu_custom_call.1} parent=1 // pred_region
      _
    $region21: #{tpu_custom_call.1} parent=1 // pred_fallthru
      _
    // Predicated region
    $region22: #{tpu_custom_call.1} parent=1 // pred_check
      _
    $region23: #{tpu_custom_call.1} parent=1 // pred_check_branch
      %65 = sbr.rel (0) target = $region25
    $region24: #{tpu_custom_call.1} parent=1 // pred_region
      %67 = dma.done [#allocation3], 32
    $region25: #{tpu_custom_call.1} parent=1 // pred_fallthru
      _
    // Predicated region
    $region26: #{tpu_custom_call.1} parent=1 // pred_check
      _
    $region27: #{tpu_custom_call.1} parent=1 // pred_check_branch
      %69 = sbr.rel (0) target = $region29
    $region28: #{tpu_custom_call.1} parent=1 // pred_region
      %71 = dma.done [#allocation6], 1024
    $region29: #{tpu_custom_call.1} parent=1 // pred_fallthru
      _
    // Predicated region
    $region30: #{tpu_custom_call.1} parent=1 // pred_check
      _
    $region31: #{tpu_custom_call.1} parent=1 // pred_check_branch
      %73 = sbr.rel (0) target = $region33
    $region32: #{tpu_custom_call.1} parent=1 // pred_region
      %75 = dma.done [#allocation6], 64
    $region33: #{tpu_custom_call.1} parent=1 // pred_fallthru
      _
    // Predicated region
    $region34: #{tpu_custom_call.1} parent=1 // pred_check
      _
    $region35: #{tpu_custom_call.1} parent=1 // pred_check_branch
      %77 = sbr.rel (0) target = $region37
    $region36: #{tpu_custom_call.1} parent=1 // pred_region
      %79 = dma.done [#allocation9], 4096
    $region37: #{tpu_custom_call.1} parent=1 // pred_fallthru
      _
    %v81 = vld [vmem:[#allocation2] sm:$0x3]
    %v82 = vpack.c.bf16 %v81, %v81
    %v83 = vld [vmem:[#allocation5] sm:$0xff]
    %v84 = vld [vmem:[#allocation5 + $0x8] sm:$0xff]
    %v85 = vld [vmem:[#allocation5 + $0x10] sm:$0xff]
    %v86 = vld [vmem:[#allocation5 + $0x18] sm:$0xff]
    %v87 = vld [vmem:[#allocation5 + $0x20] sm:$0xff]
    %v88 = vld [vmem:[#allocation5 + $0x28] sm:$0xff]
    %v89 = vld [vmem:[#allocation5 + $0x30] sm:$0xff]
    %v90 = vld [vmem:[#allocation5 + $0x38] sm:$0xff]
    %v91 = vld [vmem:[#allocation7] sm:$0xf]
    %v93 = vperm.slane %v91, 0
    %v94 = vperm.slane %v91, 1
    %v95 = vperm.slane %v91, 2
    %v96 = vperm.slane %v91, 3
    %v109 = vunpack.c.l.b16 %v83
    %v110 = vunpack.c.h.b16 %v83
    %v111 = vunpack.c.l.b16 %v84
    %v112 = vunpack.c.h.b16 %v84
    %v113 = vunpack.c.l.b16 %v85
    %v114 = vunpack.c.h.b16 %v85
    %v115 = vunpack.c.l.b16 %v86
    %v116 = vunpack.c.h.b16 %v86
    %v117 = vunpack.c.l.b16 %v87
    %v118 = vunpack.c.h.b16 %v87
    %v119 = vunpack.c.l.b16 %v88
    %v120 = vunpack.c.h.b16 %v88
    %v121 = vunpack.c.l.b16 %v89
    %v122 = vunpack.c.h.b16 %v89
    %v123 = vunpack.c.l.b16 %v90
    %v124 = vunpack.c.h.b16 %v90
    %v125 = vpack.c.b16 %v113, %v109
    %v126 = vpack.c.b16 %v114, %v110
    %v127 = vpack.c.b16 %v115, %v111
    %v128 = vpack.c.b16 %v116, %v112
    %v129 = vpack.c.b16 %v121, %v117
    %v130 = vpack.c.b16 %v122, %v118
    %v131 = vpack.c.b16 %v123, %v119
    %v132 = vpack.c.b16 %v124, %v120
    %vm141 = vcmask 261120
    %v143 = vsel %vm141, %v82, 0
    %145 = vmatpush.bf16.msra.mxu0 0
    %146 = vmatpush.bf16.msra.mxu0 0
    %147 = vmatpush.bf16.msra.mxu0 0
    %148 = vmatpush.bf16.msra.mxu0 0
    %149 = vmatpush.bf16.msra.mxu0 0
    %150 = vmatpush.bf16.msra.mxu0 0
    %151 = vmatpush.bf16.msra.mxu0 %v129
    %152 = vmatpush.bf16.msra.mxu0 %v125
    %153 = vmatmul.bf16.gmra.mxu0 %v143
    %v154 = vpop.f32.mrf.mxu0
    %v155 = vadd.f32 %v93, %v154
    %v156 = vpop.f32.mrf.mxu0
    %157 = vdwg.mxu0
    %158 = vmatpush.bf16.msra.mxu0 0
    %159 = vmatpush.bf16.msra.mxu0 0
    %160 = vmatpush.bf16.msra.mxu0 0
    %161 = vmatpush.bf16.msra.mxu0 0
    %162 = vmatpush.bf16.msra.mxu0 0
    %163 = vmatpush.bf16.msra.mxu0 0
    %164 = vmatpush.bf16.msra.mxu0 %v130
    %165 = vmatpush.bf16.msra.mxu0 %v126
    %166 = vmatmul.bf16.gmra.mxu0 %v143
    %v167 = vpop.f32.mrf.mxu0
    %v168 = vadd.f32 %v94, %v167
    %v169 = vpop.f32.mrf.mxu0
    %170 = vdwg.mxu0
    %171 = vmatpush.bf16.msra.mxu0 0
    %172 = vmatpush.bf16.msra.mxu0 0
    %173 = vmatpush.bf16.msra.mxu0 0
    %174 = vmatpush.bf16.msra.mxu0 0
    %175 = vmatpush.bf16.msra.mxu0 0
    %176 = vmatpush.bf16.msra.mxu0 0
    %177 = vmatpush.bf16.msra.mxu0 %v131
    %178 = vmatpush.bf16.msra.mxu0 %v127
    %179 = vmatmul.bf16.gmra.mxu0 %v143
    %v180 = vpop.f32.mrf.mxu0
    %v181 = vadd.f32 %v95, %v180
    %v182 = vpop.f32.mrf.mxu0
    %183 = vdwg.mxu0
    %184 = vmatpush.bf16.msra.mxu0 0
    %185 = vmatpush.bf16.msra.mxu0 0
    %186 = vmatpush.bf16.msra.mxu0 0
    %187 = vmatpush.bf16.msra.mxu0 0
    %188 = vmatpush.bf16.msra.mxu0 0
    %189 = vmatpush.bf16.msra.mxu0 0
    %190 = vmatpush.bf16.msra.mxu0 %v132
    %191 = vmatpush.bf16.msra.mxu0 %v128
    %192 = vmatmul.bf16.gmra.mxu0 %v143
    %v193 = vpop.f32.mrf.mxu0
    %v194 = vadd.f32 %v96, %v193
    %v195 = vpop.f32.mrf.mxu0
    %196 = vdwg.mxu0
    %v197 = vmax.f32 %v155, 0.0
    %v198 = vmax.f32 %v168, 0.0
    %v199 = vmax.f32 %v181, 0.0
    %v200 = vmax.f32 %v194, 0.0
    %v201 = vpack.c.bf16 %v197, %v197
    %v202 = vpack.c.bf16 %v198, %v198
    %v203 = vpack.c.bf16 %v199, %v199
    %v204 = vpack.c.bf16 %v200, %v200
    %v205 = vld [vmem:[#allocation8] sm:$0xf]
    %v206 = vld [vmem:[#allocation8 + $0x4] sm:$0xf]
    %v207 = vld [vmem:[#allocation8 + $0x8] sm:$0xf]
    %v208 = vld [vmem:[#allocation8 + $0xc] sm:$0xf]
    %v209 = vld [vmem:[#allocation8 + $0x10] sm:$0xf]
    %v210 = vld [vmem:[#allocation8 + $0x14] sm:$0xf]
    %v211 = vld [vmem:[#allocation8 + $0x18] sm:$0xf]
    %v212 = vld [vmem:[#allocation8 + $0x1c] sm:$0xf]
    %v213 = vld [vmem:[#allocation8 + $0x20] sm:$0xf]
    %v214 = vld [vmem:[#allocation8 + $0x24] sm:$0xf]
    %v215 = vld [vmem:[#allocation8 + $0x28] sm:$0xf]
    %v216 = vld [vmem:[#allocation8 + $0x2c] sm:$0xf]
    %v217 = vld [vmem:[#allocation8 + $0x30] sm:$0xf]
    %v218 = vld [vmem:[#allocation8 + $0x34] sm:$0xf]
    %v219 = vld [vmem:[#allocation8 + $0x38] sm:$0xf]
    %v220 = vld [vmem:[#allocation8 + $0x3c] sm:$0xf]
    %v221 = vld [vmem:[#allocation8 + $0x40] sm:$0xf]
    %v222 = vld [vmem:[#allocation8 + $0x44] sm:$0xf]
    %v223 = vld [vmem:[#allocation8 + $0x48] sm:$0xf]
    %v224 = vld [vmem:[#allocation8 + $0x4c] sm:$0xf]
    %v225 = vld [vmem:[#allocation8 + $0x50] sm:$0xf]
    %v226 = vld [vmem:[#allocation8 + $0x54] sm:$0xf]
    %v227 = vld [vmem:[#allocation8 + $0x58] sm:$0xf]
    %v228 = vld [vmem:[#allocation8 + $0x5c] sm:$0xf]
    %v229 = vld [vmem:[#allocation8 + $0x60] sm:$0xf]
    %v230 = vld [vmem:[#allocation8 + $0x64] sm:$0xf]
    %v231 = vld [vmem:[#allocation8 + $0x68] sm:$0xf]
    %v232 = vld [vmem:[#allocation8 + $0x6c] sm:$0xf]
    %v233 = vld [vmem:[#allocation8 + $0x70] sm:$0xf]
    %v234 = vld [vmem:[#allocation8 + $0x74] sm:$0xf]
    %v235 = vld [vmem:[#allocation8 + $0x78] sm:$0xf]
    %v236 = vld [vmem:[#allocation8 + $0x7c] sm:$0xf]
    %v237 = vld [vmem:[#allocation8 + $0x80] sm:$0xf]
    %v238 = vld [vmem:[#allocation8 + $0x84] sm:$0xf]
    %v239 = vld [vmem:[#allocation8 + $0x88] sm:$0xf]
    %v240 = vld [vmem:[#allocation8 + $0x8c] sm:$0xf]
    %v241 = vld [vmem:[#allocation8 + $0x90] sm:$0xf]
    %v242 = vld [vmem:[#allocation8 + $0x94] sm:$0xf]
    %v243 = vld [vmem:[#allocation8 + $0x98] sm:$0xf]
    %v244 = vld [vmem:[#allocation8 + $0x9c] sm:$0xf]
    %v245 = vld [vmem:[#allocation8 + $0xa0] sm:$0xf]
    %v246 = vld [vmem:[#allocation8 + $0xa4] sm:$0xf]
    %v247 = vld [vmem:[#allocation8 + $0xa8] sm:$0xf]
    %v248 = vld [vmem:[#allocation8 + $0xac] sm:$0xf]
    %v249 = vld [vmem:[#allocation8 + $0xb0] sm:$0xf]
    %v250 = vld [vmem:[#allocation8 + $0xb4] sm:$0xf]
    %v251 = vld [vmem:[#allocation8 + $0xb8] sm:$0xf]
    %v252 = vld [vmem:[#allocation8 + $0xbc] sm:$0xf]
    %v253 = vld [vmem:[#allocation8 + $0xc0] sm:$0xf]
    %v254 = vld [vmem:[#allocation8 + $0xc4] sm:$0xf]
    %v255 = vld [vmem:[#allocation8 + $0xc8] sm:$0xf]
    %v256 = vld [vmem:[#allocation8 + $0xcc] sm:$0xf]
    %v257 = vld [vmem:[#allocation8 + $0xd0] sm:$0xf]
    %v258 = vld [vmem:[#allocation8 + $0xd4] sm:$0xf]
    %v259 = vld [vmem:[#allocation8 + $0xd8] sm:$0xf]
    %v260 = vld [vmem:[#allocation8 + $0xdc] sm:$0xf]
    %v261 = vld [vmem:[#allocation8 + $0xe0] sm:$0xf]
    %v262 = vld [vmem:[#allocation8 + $0xe4] sm:$0xf]
    %v263 = vld [vmem:[#allocation8 + $0xe8] sm:$0xf]
    %v264 = vld [vmem:[#allocation8 + $0xec] sm:$0xf]
    %v265 = vld [vmem:[#allocation8 + $0xf0] sm:$0xf]
    %v266 = vld [vmem:[#allocation8 + $0xf4] sm:$0xf]
    %v267 = vld [vmem:[#allocation8 + $0xf8] sm:$0xf]
    %v268 = vld [vmem:[#allocation8 + $0xfc] sm:$0xf]
    %v269 = vld [vmem:[%s4] sm:$0x1]
    %v271 = vperm.slane %v269, 0
    %v337 = vunpack.c.l.b16 %v205
    %v338 = vunpack.c.l.b16 %v206
    %v339 = vunpack.c.l.b16 %v207
    %v340 = vunpack.c.l.b16 %v208
    %v341 = vunpack.c.l.b16 %v209
    %v342 = vunpack.c.l.b16 %v210
    %v343 = vunpack.c.l.b16 %v211
    %v344 = vunpack.c.l.b16 %v212
    %v345 = vunpack.c.l.b16 %v213
    %v346 = vunpack.c.l.b16 %v214
    %v347 = vunpack.c.l.b16 %v215
    %v348 = vunpack.c.l.b16 %v216
    %v349 = vunpack.c.l.b16 %v217
    %v350 = vunpack.c.l.b16 %v218
    %v351 = vunpack.c.l.b16 %v219
    %v352 = vunpack.c.l.b16 %v220
    %v353 = vunpack.c.l.b16 %v221
    %v354 = vunpack.c.l.b16 %v222
    %v355 = vunpack.c.l.b16 %v223
    %v356 = vunpack.c.l.b16 %v224
    %v357 = vunpack.c.l.b16 %v225
    %v358 = vunpack.c.l.b16 %v226
    %v359 = vunpack.c.l.b16 %v227
    %v360 = vunpack.c.l.b16 %v228
    %v361 = vunpack.c.l.b16 %v229
    %v362 = vunpack.c.l.b16 %v230
    %v363 = vunpack.c.l.b16 %v231
    %v364 = vunpack.c.l.b16 %v232
    %v365 = vunpack.c.l.b16 %v233
    %v366 = vunpack.c.l.b16 %v234
    %v367 = vunpack.c.l.b16 %v235
    %v368 = vunpack.c.l.b16 %v236
    %v369 = vunpack.c.l.b16 %v237
    %v370 = vunpack.c.l.b16 %v238
    %v371 = vunpack.c.l.b16 %v239
    %v372 = vunpack.c.l.b16 %v240
    %v373 = vunpack.c.l.b16 %v241
    %v374 = vunpack.c.l.b16 %v242
    %v375 = vunpack.c.l.b16 %v243
    %v376 = vunpack.c.l.b16 %v244
    %v377 = vunpack.c.l.b16 %v245
    %v378 = vunpack.c.l.b16 %v246
    %v379 = vunpack.c.l.b16 %v247
    %v380 = vunpack.c.l.b16 %v248
    %v381 = vunpack.c.l.b16 %v249
    %v382 = vunpack.c.l.b16 %v250
    %v383 = vunpack.c.l.b16 %v251
    %v384 = vunpack.c.l.b16 %v252
    %v385 = vunpack.c.l.b16 %v253
    %v386 = vunpack.c.l.b16 %v254
    %v387 = vunpack.c.l.b16 %v255
    %v388 = vunpack.c.l.b16 %v256
    %v389 = vunpack.c.l.b16 %v257
    %v390 = vunpack.c.l.b16 %v258
    %v391 = vunpack.c.l.b16 %v259
    %v392 = vunpack.c.l.b16 %v260
    %v393 = vunpack.c.l.b16 %v261
    %v394 = vunpack.c.l.b16 %v262
    %v395 = vunpack.c.l.b16 %v263
    %v396 = vunpack.c.l.b16 %v264
    %v397 = vunpack.c.l.b16 %v265
    %v398 = vunpack.c.l.b16 %v266
    %v399 = vunpack.c.l.b16 %v267
    %v400 = vunpack.c.l.b16 %v268
    %v401 = vpack.c.b16 %v338, %v337
    %v402 = vpack.c.b16 %v340, %v339
    %v403 = vpack.c.b16 %v342, %v341
    %v404 = vpack.c.b16 %v344, %v343
    %v405 = vpack.c.b16 %v346, %v345
    %v406 = vpack.c.b16 %v348, %v347
    %v407 = vpack.c.b16 %v350, %v349
    %v408 = vpack.c.b16 %v352, %v351
    %v409 = vpack.c.b16 %v354, %v353
    %v410 = vpack.c.b16 %v356, %v355
    %v411 = vpack.c.b16 %v358, %v357
    %v412 = vpack.c.b16 %v360, %v359
    %v413 = vpack.c.b16 %v362, %v361
    %v414 = vpack.c.b16 %v364, %v363
    %v415 = vpack.c.b16 %v366, %v365
    %v416 = vpack.c.b16 %v368, %v367
    %v417 = vpack.c.b16 %v370, %v369
    %v418 = vpack.c.b16 %v372, %v371
    %v419 = vpack.c.b16 %v374, %v373
    %v420 = vpack.c.b16 %v376, %v375
    %v421 = vpack.c.b16 %v378, %v377
    %v422 = vpack.c.b16 %v380, %v379
    %v423 = vpack.c.b16 %v382, %v381
    %v424 = vpack.c.b16 %v384, %v383
    %v425 = vpack.c.b16 %v386, %v385
    %v426 = vpack.c.b16 %v388, %v387
    %v427 = vpack.c.b16 %v390, %v389
    %v428 = vpack.c.b16 %v392, %v391
    %v429 = vpack.c.b16 %v394, %v393
    %v430 = vpack.c.b16 %v396, %v395
    %v431 = vpack.c.b16 %v398, %v397
    %v432 = vpack.c.b16 %v400, %v399
    %465 = vmatpush.bf16.msra.mxu0 %v408
    %466 = vmatpush.bf16.msra.mxu0 %v407
    %467 = vmatpush.bf16.msra.mxu0 %v406
    %468 = vmatpush.bf16.msra.mxu0 %v405
    %469 = vmatpush.bf16.msra.mxu0 %v404
    %470 = vmatpush.bf16.msra.mxu0 %v403
    %471 = vmatpush.bf16.msra.mxu0 %v402
    %472 = vmatpush.bf16.msra.mxu0 %v401
    %473 = vmatmul.bf16.gmra.mxu0 %v201
    %v474 = vpop.f32.mrf.mxu0
    %v475 = vadd.f32 %v271, %v474
    %v476 = vpop.f32.mrf.mxu0
    %477 = vdwg.mxu0
    %478 = vmatpush.bf16.msra.mxu0 %v416
    %479 = vmatpush.bf16.msra.mxu0 %v415
    %480 = vmatpush.bf16.msra.mxu0 %v414
    %481 = vmatpush.bf16.msra.mxu0 %v413
    %482 = vmatpush.bf16.msra.mxu0 %v412
    %483 = vmatpush.bf16.msra.mxu0 %v411
    %484 = vmatpush.bf16.msra.mxu0 %v410
    %485 = vmatpush.bf16.msra.mxu0 %v409
    %486 = vmatmul.bf16.gmra.mxu0 %v202
    %v487 = vpop.f32.mrf.mxu0
    %v488 = vadd.f32 %v475, %v487
    %v489 = vpop.f32.mrf.mxu0
    %490 = vdwg.mxu0
    %491 = vmatpush.bf16.msra.mxu0 %v424
    %492 = vmatpush.bf16.msra.mxu0 %v423
    %493 = vmatpush.bf16.msra.mxu0 %v422
    %494 = vmatpush.bf16.msra.mxu0 %v421
    %495 = vmatpush.bf16.msra.mxu0 %v420
    %496 = vmatpush.bf16.msra.mxu0 %v419
    %497 = vmatpush.bf16.msra.mxu0 %v418
    %498 = vmatpush.bf16.msra.mxu0 %v417
    %499 = vmatmul.bf16.gmra.mxu0 %v203
    %v500 = vpop.f32.mrf.mxu0
    %v501 = vadd.f32 %v488, %v500
    %v502 = vpop.f32.mrf.mxu0
    %503 = vdwg.mxu0
    %504 = vmatpush.bf16.msra.mxu0 %v432
    %505 = vmatpush.bf16.msra.mxu0 %v431
    %506 = vmatpush.bf16.msra.mxu0 %v430
    %507 = vmatpush.bf16.msra.mxu0 %v429
    %508 = vmatpush.bf16.msra.mxu0 %v428
    %509 = vmatpush.bf16.msra.mxu0 %v427
    %510 = vmatpush.bf16.msra.mxu0 %v426
    %511 = vmatpush.bf16.msra.mxu0 %v425
    %512 = vmatmul.bf16.gmra.mxu0 %v204
    %v513 = vpop.f32.mrf.mxu0
    %v514 = vadd.f32 %v501, %v513
    %v515 = vpop.f32.mrf.mxu0
    %516 = vdwg.mxu0
    %v517 = vlaneseq
    %v518 = vand.u32 %v517, 127
    %vm519 = vcmp.lt.s32.totalorder %v518, 4
    %v520 = vmul.f32 %v514, 2.0
    %v521 = vsel %vm519, %v514, %v520
    %v522 = vsub.f32 0.0, %v521
    %v523 = vmul.f32 %v522, 1.442695
    %v524 = vpow.pop %v523
    %v525 = vadd.f32 %v524, 1.0
    %v526 = vrcp.pop %v525
    %v527 = vmul.f32 %v526, 5.0
    %v528 = vadd.f32 %v527, -5.0
    %vm529 = vcmp.lt.s32.totalorder %v518, 8
    %v530 = vsel %vm529, %v528, %v514
    %v531 = vsel %vm519, %v526, %v530
    %532 = vst [vmem:[#allocation10] sm:$0x3] %v531
    // Predicated region
    $region38: #{tpu_custom_call.1} parent=1 // pred_check
      _
    $region39: #{tpu_custom_call.1} parent=1 // pred_check_branch
      %534 = sbr.rel (0) target = $region41
    $region40: #{tpu_custom_call.1} parent=1 // pred_region
      %536 = vsyncadd [#allocation4], 0
      %s538 = sshll.u32 [#allocation10], 4
      %s539 = int_to_ptr.vmem [resolvable:$true] %s538
      %s540 = sshll.u32 %s5, 4
      %s541 = int_to_ptr.hbm [resolvable:$true] %s540
      %543 = dma.vmem_to_hbm [thread:$0]  %s539, 32, %s541, [#allocation4]
    $region41: #{tpu_custom_call.1} parent=1 // pred_fallthru
      _
    // Predicated region
    $region42: #{tpu_custom_call.1} parent=1 // pred_check
      _
    $region43: #{tpu_custom_call.1} parent=1 // pred_check_branch
      %545 = sbr.rel (0) target = $region45
    $region44: #{tpu_custom_call.1} parent=1 // pred_region
      %547 = dma.done [#allocation4], 32
    $region45: #{tpu_custom_call.1} parent=1 // pred_fallthru
      _
    %548 = vsyncpa [#allocation3], 1
    %549 = vsyncpa [#allocation6], 1
    %550 = vsyncpa [#allocation9], 1
    %551 = vsyncpa [#allocation4], 1

// kernel: tpu_custom_call.1
$region0: #{tpu_custom_call.1}
  #allocation0 [shape = 'u32[]', space=smem, size = 0x4, offset = 0x4, fixed_abs, tag = 'smem constant byte address 0x4 - core index']
  #allocation1 [shape = 'u32[72,128]{1,0:T(1,128)}', space=vmem, size = 0x9000, scoped, tag = 'internal scratch']
  %s0 = inlined_call_operand.hbm [shape: f32[2,32], index: 0, kind: input, shape index: {}]
  %s1 = inlined_call_operand.hbm [shape: bf16[32,512], index: 1, kind: input, shape index: {}]
  %s2 = inlined_call_operand.hbm [shape: f32[1,512], index: 2, kind: input, shape index: {}]
  %s3 = inlined_call_operand.hbm [shape: bf16[512,128], index: 3, kind: input, shape index: {}]
  %s4 = inlined_call_operand.vmem [shape: f32[1,128], index: 4, kind: input, shape index: {}]
  %s5 = inlined_call_operand.hbm [shape: f32[2,128], index: 5, kind: output, shape index: {}]
  %s6 = sld [smem:[#allocation0]]
  $region46: #{tpu_custom_call.1} parent=0
    _
  %s8 = ssub.s32 1, %s6
  %s9 = scalar_select 0, %s8, %s6
  $region1: #{tpu_custom_call.1} parent=0
    #allocation2 [shape = 'u8[1024]{0}', space=vmem, size = 0x400, scoped, tag = 'input window, operand 0, single buffered']
    #allocation3 [shape = 's32[1]{0}', space=sflag, size = 0x4, scoped, tag = 'scoped memory for tpu_custom_call.1']
    #allocation4 [shape = 's32[1]{0}', space=sflag, size = 0x4, scoped, tag = 'scoped memory for tpu_custom_call.1']
    #allocation5 [shape = 'u8[32768]{0}', space=vmem, size = 0x8000, scoped, tag = 'input window, operand 1, single buffered']
    #allocation6 [shape = 's32[1]{0}', space=sflag, size = 0x4, scoped, tag = 'scoped memory for tpu_custom_call.1']
    #allocation7 [shape = 'u8[2048]{0}', space=vmem, size = 0x800, scoped, tag = 'input window, operand 2, single buffered']
    #allocation8 [shape = 'u8[131072]{0}', space=vmem, size = 0x20000, scoped, tag = 'input window, operand 3, single buffered']
    #allocation9 [shape = 's32[1]{0}', space=sflag, size = 0x4, scoped, tag = 'scoped memory for tpu_custom_call.1']
    #allocation10 [shape = 'u8[1024]{0}', space=vmem, size = 0x400, scoped, tag = 'output window, operand 0, single buffered']
    %10 = vsyncpa [#allocation3], 0
    %11 = vsyncpa [#allocation6], 0
    %12 = vsyncpa [#allocation9], 0
    %13 = vsyncpa [#allocation4], 0
    // Predicated region
    $region2: #{tpu_custom_call.1} parent=1 // pred_check
      _
    $region3: #{tpu_custom_call.1} parent=1 // pred_check_branch
      %15 = sbr.rel (0) target = $region5
    $region4: #{tpu_custom_call.1} parent=1 // pred_region
      %17 = vsyncadd [#allocation3], 0
      %s19 = sshll.u32 %s0, 4
      %s20 = int_to_ptr.hbm [resolvable:$true] %s19
      %s21 = sshll.u32 [#allocation2], 4
      %s22 = int_to_ptr.vmem [resolvable:$true] %s21
      %24 = dma.hbm_to_vmem [thread:$0]  %s20, 32, %s22, [#allocation3]
    $region5: #{tpu_custom_call.1} parent=1 // pred_fallthru
      _
    // Predicated region
    $region6: #{tpu_custom_call.1} parent=1 // pred_check
      _
    $region7: #{tpu_custom_call.1} parent=1 // pred_check_branch
      %26 = sbr.rel (0) target = $region9
    $region8: #{tpu_custom_call.1} parent=1 // pred_region
      %28 = vsyncadd [#allocation6], 0
      %s29 = sshll.u32 %s1, 4
      %s30 = int_to_ptr.hbm [resolvable:$true] %s29
      %s31 = sshll.u32 [#allocation5], 4
      %s32 = int_to_ptr.vmem [resolvable:$true] %s31
      %37 = dma.hbm_to_vmem [thread:$0]  %s30, 1024, %s32, [#allocation6], 256, 256, 16
    $region9: #{tpu_custom_call.1} parent=1 // pred_fallthru
      _
    // Predicated region
    $region10: #{tpu_custom_call.1} parent=1 // pred_check
      _
    $region11: #{tpu_custom_call.1} parent=1 // pred_check_branch
      %39 = sbr.rel (0) target = $region13
    $region12: #{tpu_custom_call.1} parent=1 // pred_region
      %41 = vsyncadd [#allocation6], 0
      %s43 = sshll.u32 %s2, 4
      %s44 = int_to_ptr.hbm [resolvable:$true] %s43
      %s45 = sshll.u32 [#allocation7], 4
      %s46 = int_to_ptr.vmem [resolvable:$true] %s45
      %48 = dma.hbm_to_vmem [thread:$0]  %s44, 64, %s46, [#allocation6]
    $region13: #{tpu_custom_call.1} parent=1 // pred_fallthru
      _
    // Predicated region
    $region14: #{tpu_custom_call.1} parent=1 // pred_check
      _
    $region15: #{tpu_custom_call.1} parent=1 // pred_check_branch
      %50 = sbr.rel (0) target = $region17
    $region16: #{tpu_custom_call.1} parent=1 // pred_region
      %52 = vsyncadd [#allocation9], 0
      %s53 = sshll.u32 %s3, 4
      %s54 = int_to_ptr.hbm [resolvable:$true] %s53
      %s55 = sshll.u32 [#allocation8], 4
      %s56 = int_to_ptr.vmem [resolvable:$true] %s55
      %61 = dma.hbm_to_vmem [thread:$0]  %s54, 4096, %s56, [#allocation9], 64, 64, 4
    $region17: #{tpu_custom_call.1} parent=1 // pred_fallthru
      _
    // Predicated region
    $region18: #{tpu_custom_call.1} parent=1 // pred_check
      _
    $region19: #{tpu_custom_call.1} parent=1 // pred_check_branch
      %63 = sbr.rel (0) target = $region21
    $region20: #{tpu_custom_call.1} parent=1 // pred_region
      _
    $region21: #{tpu_custom_call.1} parent=1 // pred_fallthru
      _
    // Predicated region
    $region22: #{tpu_custom_call.1} parent=1 // pred_check
      _
    $region23: #{tpu_custom_call.1} parent=1 // pred_check_branch
      %65 = sbr.rel (0) target = $region25
    $region24: #{tpu_custom_call.1} parent=1 // pred_region
      %67 = dma.done [#allocation3], 32
    $region25: #{tpu_custom_call.1} parent=1 // pred_fallthru
      _
    // Predicated region
    $region26: #{tpu_custom_call.1} parent=1 // pred_check
      _
    $region27: #{tpu_custom_call.1} parent=1 // pred_check_branch
      %69 = sbr.rel (0) target = $region29
    $region28: #{tpu_custom_call.1} parent=1 // pred_region
      %71 = dma.done [#allocation6], 1024
    $region29: #{tpu_custom_call.1} parent=1 // pred_fallthru
      _
    // Predicated region
    $region30: #{tpu_custom_call.1} parent=1 // pred_check
      _
    $region31: #{tpu_custom_call.1} parent=1 // pred_check_branch
      %73 = sbr.rel (0) target = $region33
    $region32: #{tpu_custom_call.1} parent=1 // pred_region
      %75 = dma.done [#allocation6], 64
    $region33: #{tpu_custom_call.1} parent=1 // pred_fallthru
      _
    // Predicated region
    $region34: #{tpu_custom_call.1} parent=1 // pred_check
      _
    $region35: #{tpu_custom_call.1} parent=1 // pred_check_branch
      %77 = sbr.rel (0) target = $region37
    $region36: #{tpu_custom_call.1} parent=1 // pred_region
      %79 = dma.done [#allocation9], 4096
    $region37: #{tpu_custom_call.1} parent=1 // pred_fallthru
      _
    %v81 = vld [vmem:[#allocation2] sm:$0x3]
    %v82 = vpack.c.bf16 %v81, %v81
    %v83 = vld [vmem:[#allocation5] sm:$0xff]
    %v84 = vld [vmem:[#allocation5 + $0x8] sm:$0xff]
    %v85 = vld [vmem:[#allocation5 + $0x10] sm:$0xff]
    %v86 = vld [vmem:[#allocation5 + $0x18] sm:$0xff]
    %v87 = vld [vmem:[#allocation5 + $0x20] sm:$0xff]
    %v88 = vld [vmem:[#allocation5 + $0x28] sm:$0xff]
    %v89 = vld [vmem:[#allocation5 + $0x30] sm:$0xff]
    %v90 = vld [vmem:[#allocation5 + $0x38] sm:$0xff]
    %v91 = vld [vmem:[#allocation7] sm:$0xf]
    %v93 = vperm.slane %v91, 0
    %v94 = vperm.slane %v91, 1
    %v95 = vperm.slane %v91, 2
    %v96 = vperm.slane %v91, 3
    %v109 = vunpack.c.l.b16 %v83
    %v110 = vunpack.c.h.b16 %v83
    %v111 = vunpack.c.l.b16 %v84
    %v112 = vunpack.c.h.b16 %v84
    %v113 = vunpack.c.l.b16 %v85
    %v114 = vunpack.c.h.b16 %v85
    %v115 = vunpack.c.l.b16 %v86
    %v116 = vunpack.c.h.b16 %v86
    %v117 = vunpack.c.l.b16 %v87
    %v118 = vunpack.c.h.b16 %v87
    %v119 = vunpack.c.l.b16 %v88
    %v120 = vunpack.c.h.b16 %v88
    %v121 = vunpack.c.l.b16 %v89
    %v122 = vunpack.c.h.b16 %v89
    %v123 = vunpack.c.l.b16 %v90
    %v124 = vunpack.c.h.b16 %v90
    %v125 = vpack.c.b16 %v113, %v109
    %v126 = vpack.c.b16 %v114, %v110
    %v127 = vpack.c.b16 %v115, %v111
    %v128 = vpack.c.b16 %v116, %v112
    %v129 = vpack.c.b16 %v121, %v117
    %v130 = vpack.c.b16 %v122, %v118
    %v131 = vpack.c.b16 %v123, %v119
    %v132 = vpack.c.b16 %v124, %v120
    %vm141 = vcmask 261120
    %v143 = vsel %vm141, %v82, 0
    %145 = vmatpush.bf16.msra.mxu0 0
    %146 = vmatpush.bf16.msra.mxu0 0
    %147 = vmatpush.bf16.msra.mxu0 0
    %148 = vmatpush.bf16.msra.mxu0 0
    %149 = vmatpush.bf16.msra.mxu0 0
    %150 = vmatpush.bf16.msra.mxu0 0
    %151 = vmatpush.bf16.msra.mxu0 %v129
    %152 = vmatpush.bf16.msra.mxu0 %v125
    %153 = vmatmul.bf16.gmra.mxu0 %v143
    %v154 = vpop.f32.mrf.mxu0
    %v155 = vadd.f32 %v93, %v154
    %v156 = vpop.f32.mrf.mxu0
    %157 = vdwg.mxu0
    %158 = vmatpush.bf16.msra.mxu0 0
    %159 = vmatpush.bf16.msra.mxu0 0
    %160 = vmatpush.bf16.msra.mxu0 0
    %161 = vmatpush.bf16.msra.mxu0 0
    %162 = vmatpush.bf16.msra.mxu0 0
    %163 = vmatpush.bf16.msra.mxu0 0
    %164 = vmatpush.bf16.msra.mxu0 %v130
    %165 = vmatpush.bf16.msra.mxu0 %v126
    %166 = vmatmul.bf16.gmra.mxu0 %v143
    %v167 = vpop.f32.mrf.mxu0
    %v168 = vadd.f32 %v94, %v167
    %v169 = vpop.f32.mrf.mxu0
    %170 = vdwg.mxu0
    %171 = vmatpush.bf16.msra.mxu0 0
    %172 = vmatpush.bf16.msra.mxu0 0
    %173 = vmatpush.bf16.msra.mxu0 0
    %174 = vmatpush.bf16.msra.mxu0 0
    %175 = vmatpush.bf16.msra.mxu0 0
    %176 = vmatpush.bf16.msra.mxu0 0
    %177 = vmatpush.bf16.msra.mxu0 %v131
    %178 = vmatpush.bf16.msra.mxu0 %v127
    %179 = vmatmul.bf16.gmra.mxu0 %v143
    %v180 = vpop.f32.mrf.mxu0
    %v181 = vadd.f32 %v95, %v180
    %v182 = vpop.f32.mrf.mxu0
    %183 = vdwg.mxu0
    %184 = vmatpush.bf16.msra.mxu0 0
    %185 = vmatpush.bf16.msra.mxu0 0
    %186 = vmatpush.bf16.msra.mxu0 0
    %187 = vmatpush.bf16.msra.mxu0 0
    %188 = vmatpush.bf16.msra.mxu0 0
    %189 = vmatpush.bf16.msra.mxu0 0
    %190 = vmatpush.bf16.msra.mxu0 %v132
    %191 = vmatpush.bf16.msra.mxu0 %v128
    %192 = vmatmul.bf16.gmra.mxu0 %v143
    %v193 = vpop.f32.mrf.mxu0
    %v194 = vadd.f32 %v96, %v193
    %v195 = vpop.f32.mrf.mxu0
    %196 = vdwg.mxu0
    %v197 = vmax.f32 %v155, 0.0
    %v198 = vmax.f32 %v168, 0.0
    %v199 = vmax.f32 %v181, 0.0
    %v200 = vmax.f32 %v194, 0.0
    %v201 = vpack.c.bf16 %v197, %v197
    %v202 = vpack.c.bf16 %v198, %v198
    %v203 = vpack.c.bf16 %v199, %v199
    %v204 = vpack.c.bf16 %v200, %v200
    %v205 = vld [vmem:[#allocation8] sm:$0xf]
    %v206 = vld [vmem:[#allocation8 + $0x4] sm:$0xf]
    %v207 = vld [vmem:[#allocation8 + $0x8] sm:$0xf]
    %v208 = vld [vmem:[#allocation8 + $0xc] sm:$0xf]
    %v209 = vld [vmem:[#allocation8 + $0x10] sm:$0xf]
    %v210 = vld [vmem:[#allocation8 + $0x14] sm:$0xf]
    %v211 = vld [vmem:[#allocation8 + $0x18] sm:$0xf]
    %v212 = vld [vmem:[#allocation8 + $0x1c] sm:$0xf]
    %v213 = vld [vmem:[#allocation8 + $0x20] sm:$0xf]
    %v214 = vld [vmem:[#allocation8 + $0x24] sm:$0xf]
    %v215 = vld [vmem:[#allocation8 + $0x28] sm:$0xf]
    %v216 = vld [vmem:[#allocation8 + $0x2c] sm:$0xf]
    %v217 = vld [vmem:[#allocation8 + $0x30] sm:$0xf]
    %v218 = vld [vmem:[#allocation8 + $0x34] sm:$0xf]
    %v219 = vld [vmem:[#allocation8 + $0x38] sm:$0xf]
    %v220 = vld [vmem:[#allocation8 + $0x3c] sm:$0xf]
    %v221 = vld [vmem:[#allocation8 + $0x40] sm:$0xf]
    %v222 = vld [vmem:[#allocation8 + $0x44] sm:$0xf]
    %v223 = vld [vmem:[#allocation8 + $0x48] sm:$0xf]
    %v224 = vld [vmem:[#allocation8 + $0x4c] sm:$0xf]
    %v225 = vld [vmem:[#allocation8 + $0x50] sm:$0xf]
    %v226 = vld [vmem:[#allocation8 + $0x54] sm:$0xf]
    %v227 = vld [vmem:[#allocation8 + $0x58] sm:$0xf]
    %v228 = vld [vmem:[#allocation8 + $0x5c] sm:$0xf]
    %v229 = vld [vmem:[#allocation8 + $0x60] sm:$0xf]
    %v230 = vld [vmem:[#allocation8 + $0x64] sm:$0xf]
    %v231 = vld [vmem:[#allocation8 + $0x68] sm:$0xf]
    %v232 = vld [vmem:[#allocation8 + $0x6c] sm:$0xf]
    %v233 = vld [vmem:[#allocation8 + $0x70] sm:$0xf]
    %v234 = vld [vmem:[#allocation8 + $0x74] sm:$0xf]
    %v235 = vld [vmem:[#allocation8 + $0x78] sm:$0xf]
    %v236 = vld [vmem:[#allocation8 + $0x7c] sm:$0xf]
    %v237 = vld [vmem:[#allocation8 + $0x80] sm:$0xf]
    %v238 = vld [vmem:[#allocation8 + $0x84] sm:$0xf]
    %v239 = vld [vmem:[#allocation8 + $0x88] sm:$0xf]
    %v240 = vld [vmem:[#allocation8 + $0x8c] sm:$0xf]
    %v241 = vld [vmem:[#allocation8 + $0x90] sm:$0xf]
    %v242 = vld [vmem:[#allocation8 + $0x94] sm:$0xf]
    %v243 = vld [vmem:[#allocation8 + $0x98] sm:$0xf]
    %v244 = vld [vmem:[#allocation8 + $0x9c] sm:$0xf]
    %v245 = vld [vmem:[#allocation8 + $0xa0] sm:$0xf]
    %v246 = vld [vmem:[#allocation8 + $0xa4] sm:$0xf]
    %v247 = vld [vmem:[#allocation8 + $0xa8] sm:$0xf]
    %v248 = vld [vmem:[#allocation8 + $0xac] sm:$0xf]
    %v249 = vld [vmem:[#allocation8 + $0xb0] sm:$0xf]
    %v250 = vld [vmem:[#allocation8 + $0xb4] sm:$0xf]
    %v251 = vld [vmem:[#allocation8 + $0xb8] sm:$0xf]
    %v252 = vld [vmem:[#allocation8 + $0xbc] sm:$0xf]
    %v253 = vld [vmem:[#allocation8 + $0xc0] sm:$0xf]
    %v254 = vld [vmem:[#allocation8 + $0xc4] sm:$0xf]
    %v255 = vld [vmem:[#allocation8 + $0xc8] sm:$0xf]
    %v256 = vld [vmem:[#allocation8 + $0xcc] sm:$0xf]
    %v257 = vld [vmem:[#allocation8 + $0xd0] sm:$0xf]
    %v258 = vld [vmem:[#allocation8 + $0xd4] sm:$0xf]
    %v259 = vld [vmem:[#allocation8 + $0xd8] sm:$0xf]
    %v260 = vld [vmem:[#allocation8 + $0xdc] sm:$0xf]
    %v261 = vld [vmem:[#allocation8 + $0xe0] sm:$0xf]
    %v262 = vld [vmem:[#allocation8 + $0xe4] sm:$0xf]
    %v263 = vld [vmem:[#allocation8 + $0xe8] sm:$0xf]
    %v264 = vld [vmem:[#allocation8 + $0xec] sm:$0xf]
    %v265 = vld [vmem:[#allocation8 + $0xf0] sm:$0xf]
    %v266 = vld [vmem:[#allocation8 + $0xf4] sm:$0xf]
    %v267 = vld [vmem:[#allocation8 + $0xf8] sm:$0xf]
    %v268 = vld [vmem:[#allocation8 + $0xfc] sm:$0xf]
    %v269 = vld [vmem:[%s4] sm:$0x1]
    %v271 = vperm.slane %v269, 0
    %v337 = vunpack.c.l.b16 %v205
    %v338 = vunpack.c.l.b16 %v206
    %v339 = vunpack.c.l.b16 %v207
    %v340 = vunpack.c.l.b16 %v208
    %v341 = vunpack.c.l.b16 %v209
    %v342 = vunpack.c.l.b16 %v210
    %v343 = vunpack.c.l.b16 %v211
    %v344 = vunpack.c.l.b16 %v212
    %v345 = vunpack.c.l.b16 %v213
    %v346 = vunpack.c.l.b16 %v214
    %v347 = vunpack.c.l.b16 %v215
    %v348 = vunpack.c.l.b16 %v216
    %v349 = vunpack.c.l.b16 %v217
    %v350 = vunpack.c.l.b16 %v218
    %v351 = vunpack.c.l.b16 %v219
    %v352 = vunpack.c.l.b16 %v220
    %v353 = vunpack.c.l.b16 %v221
    %v354 = vunpack.c.l.b16 %v222
    %v355 = vunpack.c.l.b16 %v223
    %v356 = vunpack.c.l.b16 %v224
    %v357 = vunpack.c.l.b16 %v225
    %v358 = vunpack.c.l.b16 %v226
    %v359 = vunpack.c.l.b16 %v227
    %v360 = vunpack.c.l.b16 %v228
    %v361 = vunpack.c.l.b16 %v229
    %v362 = vunpack.c.l.b16 %v230
    %v363 = vunpack.c.l.b16 %v231
    %v364 = vunpack.c.l.b16 %v232
    %v365 = vunpack.c.l.b16 %v233
    %v366 = vunpack.c.l.b16 %v234
    %v367 = vunpack.c.l.b16 %v235
    %v368 = vunpack.c.l.b16 %v236
    %v369 = vunpack.c.l.b16 %v237
    %v370 = vunpack.c.l.b16 %v238
    %v371 = vunpack.c.l.b16 %v239
    %v372 = vunpack.c.l.b16 %v240
    %v373 = vunpack.c.l.b16 %v241
    %v374 = vunpack.c.l.b16 %v242
    %v375 = vunpack.c.l.b16 %v243
    %v376 = vunpack.c.l.b16 %v244
    %v377 = vunpack.c.l.b16 %v245
    %v378 = vunpack.c.l.b16 %v246
    %v379 = vunpack.c.l.b16 %v247
    %v380 = vunpack.c.l.b16 %v248
    %v381 = vunpack.c.l.b16 %v249
    %v382 = vunpack.c.l.b16 %v250
    %v383 = vunpack.c.l.b16 %v251
    %v384 = vunpack.c.l.b16 %v252
    %v385 = vunpack.c.l.b16 %v253
    %v386 = vunpack.c.l.b16 %v254
    %v387 = vunpack.c.l.b16 %v255
    %v388 = vunpack.c.l.b16 %v256
    %v389 = vunpack.c.l.b16 %v257
    %v390 = vunpack.c.l.b16 %v258
    %v391 = vunpack.c.l.b16 %v259
    %v392 = vunpack.c.l.b16 %v260
    %v393 = vunpack.c.l.b16 %v261
    %v394 = vunpack.c.l.b16 %v262
    %v395 = vunpack.c.l.b16 %v263
    %v396 = vunpack.c.l.b16 %v264
    %v397 = vunpack.c.l.b16 %v265
    %v398 = vunpack.c.l.b16 %v266
    %v399 = vunpack.c.l.b16 %v267
    %v400 = vunpack.c.l.b16 %v268
    %v401 = vpack.c.b16 %v338, %v337
    %v402 = vpack.c.b16 %v340, %v339
    %v403 = vpack.c.b16 %v342, %v341
    %v404 = vpack.c.b16 %v344, %v343
    %v405 = vpack.c.b16 %v346, %v345
    %v406 = vpack.c.b16 %v348, %v347
    %v407 = vpack.c.b16 %v350, %v349
    %v408 = vpack.c.b16 %v352, %v351
    %v409 = vpack.c.b16 %v354, %v353
    %v410 = vpack.c.b16 %v356, %v355
    %v411 = vpack.c.b16 %v358, %v357
    %v412 = vpack.c.b16 %v360, %v359
    %v413 = vpack.c.b16 %v362, %v361
    %v414 = vpack.c.b16 %v364, %v363
    %v415 = vpack.c.b16 %v366, %v365
    %v416 = vpack.c.b16 %v368, %v367
    %v417 = vpack.c.b16 %v370, %v369
    %v418 = vpack.c.b16 %v372, %v371
    %v419 = vpack.c.b16 %v374, %v373
    %v420 = vpack.c.b16 %v376, %v375
    %v421 = vpack.c.b16 %v378, %v377
    %v422 = vpack.c.b16 %v380, %v379
    %v423 = vpack.c.b16 %v382, %v381
    %v424 = vpack.c.b16 %v384, %v383
    %v425 = vpack.c.b16 %v386, %v385
    %v426 = vpack.c.b16 %v388, %v387
    %v427 = vpack.c.b16 %v390, %v389
    %v428 = vpack.c.b16 %v392, %v391
    %v429 = vpack.c.b16 %v394, %v393
    %v430 = vpack.c.b16 %v396, %v395
    %v431 = vpack.c.b16 %v398, %v397
    %v432 = vpack.c.b16 %v400, %v399
    %465 = vmatpush.bf16.msra.mxu0 %v408
    %466 = vmatpush.bf16.msra.mxu0 %v407
    %467 = vmatpush.bf16.msra.mxu0 %v406
    %468 = vmatpush.bf16.msra.mxu0 %v405
    %469 = vmatpush.bf16.msra.mxu0 %v404
    %470 = vmatpush.bf16.msra.mxu0 %v403
    %471 = vmatpush.bf16.msra.mxu0 %v402
    %472 = vmatpush.bf16.msra.mxu0 %v401
    %473 = vmatmul.bf16.gmra.mxu0 %v201
    %v474 = vpop.f32.mrf.mxu0
    %v475 = vadd.f32 %v271, %v474
    %v476 = vpop.f32.mrf.mxu0
    %477 = vdwg.mxu0
    %478 = vmatpush.bf16.msra.mxu0 %v416
    %479 = vmatpush.bf16.msra.mxu0 %v415
    %480 = vmatpush.bf16.msra.mxu0 %v414
    %481 = vmatpush.bf16.msra.mxu0 %v413
    %482 = vmatpush.bf16.msra.mxu0 %v412
    %483 = vmatpush.bf16.msra.mxu0 %v411
    %484 = vmatpush.bf16.msra.mxu0 %v410
    %485 = vmatpush.bf16.msra.mxu0 %v409
    %486 = vmatmul.bf16.gmra.mxu0 %v202
    %v487 = vpop.f32.mrf.mxu0
    %v488 = vadd.f32 %v475, %v487
    %v489 = vpop.f32.mrf.mxu0
    %490 = vdwg.mxu0
    %491 = vmatpush.bf16.msra.mxu0 %v424
    %492 = vmatpush.bf16.msra.mxu0 %v423
    %493 = vmatpush.bf16.msra.mxu0 %v422
    %494 = vmatpush.bf16.msra.mxu0 %v421
    %495 = vmatpush.bf16.msra.mxu0 %v420
    %496 = vmatpush.bf16.msra.mxu0 %v419
    %497 = vmatpush.bf16.msra.mxu0 %v418
    %498 = vmatpush.bf16.msra.mxu0 %v417
    %499 = vmatmul.bf16.gmra.mxu0 %v203
    %v500 = vpop.f32.mrf.mxu0
    %v501 = vadd.f32 %v488, %v500
    %v502 = vpop.f32.mrf.mxu0
    %503 = vdwg.mxu0
    %504 = vmatpush.bf16.msra.mxu0 %v432
    %505 = vmatpush.bf16.msra.mxu0 %v431
    %506 = vmatpush.bf16.msra.mxu0 %v430
    %507 = vmatpush.bf16.msra.mxu0 %v429
    %508 = vmatpush.bf16.msra.mxu0 %v428
    %509 = vmatpush.bf16.msra.mxu0 %v427
    %510 = vmatpush.bf16.msra.mxu0 %v426
    %511 = vmatpush.bf16.msra.mxu0 %v425
    %512 = vmatmul.bf16.gmra.mxu0 %v204
    %v513 = vpop.f32.mrf.mxu0
    %v514 = vadd.f32 %v501, %v513
    %v515 = vpop.f32.mrf.mxu0
    %516 = vdwg.mxu0
    %v517 = vlaneseq
    %v518 = vand.u32 %v517, 127
    %vm519 = vcmp.lt.s32.totalorder %v518, 4
    %v520 = vmul.f32 %v514, 2.0
    %v521 = vsel %vm519, %v514, %v520
    %v522 = vsub.f32 0.0, %v521
    %v523 = vmul.f32 %v522, 1.442695
    %v524 = vpow.pop %v523
    %v525 = vadd.f32 %v524, 1.0
    %v526 = vrcp.pop %v525
    %v527 = vmul.f32 %v526, 5.0
    %v528 = vadd.f32 %v527, -5.0
    %vm529 = vcmp.lt.s32.totalorder %v518, 8
    %v530 = vsel %vm529, %v528, %v514
    %v531 = vsel %vm519, %v526, %v530
    %532 = vst [vmem:[#allocation10] sm:$0x3] %v531
    // Predicated region
    $region38: #{tpu_custom_call.1} parent=1 // pred_check
      _
    $region39: #{tpu_custom_call.1} parent=1 // pred_check_branch
      %534 = sbr.rel (0) target = $region41
    $region40: #{tpu_custom_call.1} parent=1 // pred_region
      %536 = vsyncadd [#allocation4], 0
      %s538 = sshll.u32 [#allocation10], 4
      %s539 = int_to_ptr.vmem [resolvable:$true] %s538
      %s540 = sshll.u32 %s5, 4
      %s541 = int_to_ptr.hbm [resolvable:$true] %s540
      %543 = dma.vmem_to_hbm [thread:$0]  %s539, 32, %s541, [#allocation4]
    $region41: #{tpu_custom_call.1} parent=1 // pred_fallthru
      _
    // Predicated region
    $region42: #{tpu_custom_call.1} parent=1 // pred_check
      _
    $region43: #{tpu_custom_call.1} parent=1 // pred_check_branch
      %545 = sbr.rel (0) target = $region45
    $region44: #{tpu_custom_call.1} parent=1 // pred_region
      %547 = dma.done [#allocation4], 32
    $region45: #{tpu_custom_call.1} parent=1 // pred_fallthru
      _
    %548 = vsyncpa [#allocation3], 1
    %549 = vsyncpa [#allocation6], 1
    %550 = vsyncpa [#allocation9], 1
    %551 = vsyncpa [#allocation4], 1

</llo_original>
